<compile_context>
chip_gen: v5e
topology: v5e:2x2
jax: 0.10.0
libtpu: 0.0.40
codegen_flags: <defaults>
</compile_context>

<pallas_src>
import functools

import jax
import jax.numpy as jnp
from jax.experimental import pallas as pl
from jax.experimental.pallas import tpu as pltpu


def _round_up(n, m):
    return ((n + m - 1) // m) * m


def _vmem_need_bytes(t_chunk, b_block, i_pad, h_pad):
    """Rough per-grid-step VMEM footprint (f32, double-buffered pipeline)."""
    f32 = 4
    return f32 * (
        2 * t_chunk * b_block * i_pad      # x chunk (2 pipeline buffers)
        + 2 * b_block * t_chunk * h_pad    # out chunk (2 pipeline buffers)
        + 2 * i_pad * h_pad                # W_ih^T (constant index map)
        + 2 * h_pad * h_pad                # W_hh^T (constant index map)
        + 2 * 8 * h_pad                    # bias
        + b_block * h_pad                  # h carry scratch
        + 2 * t_chunk * b_block * h_pad    # z chunk + staged hidden scratch
    )


def _pick_time_chunk(requested, S, b_block, i_pad, h_pad, budget_bytes):
    t = max(1, min(requested, S))
    while t > 8 and _vmem_need_bytes(t, b_block, i_pad, h_pad) > budget_bytes:
        t = max(8, t // 2)
    if t < S:
        # When chunking the time axis, t_chunk is the 2nd-minor dim of the
        # output block -> keep it a multiple of 8 (sublane alignment).
        t = max(8, (t // 8) * 8)
        if t >= S:
            t = S
    return t


def _default_batch_block(b_pad):
    """Split the batch axis only on multi-TensorCore parts (v7x megacore)."""
    try:
        kind = jax.devices()[0].device_kind.lower()
    except Exception:
        kind = ""
    if "v7" in kind and b_pad >= 16 and b_pad % 16 == 0:
        return b_pad // 2          # one batch block per TensorCore
    return b_pad                   # v5e/v6e (1 TC): single block, no overhead


def _rnn_chunk_kernel(x_ref, wih_ref, bias_ref, whh_ref, out_ref,
                      h_ref, z_ref, hs_ref, *, t_chunk, interleave, unroll):
    """One grid step == `t_chunk` time steps of the recurrence.

    x_ref   : (t_chunk, b_block, i_pad) f32   time-major input chunk
    wih_ref : (i_pad, h_pad) f32              W_ih^T, VMEM resident
    bias_ref: (1, h_pad) f32                  b_ih + b_hh
    whh_ref : (h_pad, h_pad) f32              W_hh^T, VMEM resident
    out_ref : (b_block, t_chunk, h_pad) f32   batch-major output block
    h_ref   : (b_block, h_pad) f32 scratch    carries h_{t-1} across chunks
    z_ref   : (t_chunk, b_block, h_pad) f32   scratch: fused input projection
    hs_ref  : (t_chunk, b_block, h_pad) f32   scratch: staged hidden states
    """
    t_b, b_b, i_p = x_ref.shape
    h_p = whh_ref.shape[1]

    # New batch block starts -> reset the hidden-state carry (h_0 = 0).
    @pl.when(pl.program_id(1) == 0)
    def _():
        h_ref[...] = jnp.zeros_like(h_ref)

    # Fused input projection for the whole chunk: one large, parallel MXU
    # matmul (throughput work hiding under the latency-bound recurrence)
    # instead of a separate XLA GEMM + z round-trip through HBM.
    x_flat = x_ref[...].reshape(t_b * b_b, i_p)
    z_flat = jnp.dot(x_flat, wih_ref[...],
                     preferred_element_type=jnp.float32) + bias_ref[...]
    z_ref[...] = z_flat.reshape(t_b, b_b, h_p)

    whh = whh_ref[...]
    h0 = h_ref[...]

    if interleave:
        # Two independent half-batch chains per step: chain B's matmul can
        # overlap chain A's tanh on the otherwise serial MXU->VPU->EUP chain.
        half = b_b // 2

        def step(t, carry):
            ha, hb = carry
            z_t = z_ref[t]
            na = jnp.tanh(z_t[:half] + jnp.dot(
                ha, whh, preferred_element_type=jnp.float32))
            nb = jnp.tanh(z_t[half:] + jnp.dot(
                hb, whh, preferred_element_type=jnp.float32))
            hs_ref[t] = jnp.concatenate([na, nb], axis=0)
            return na, nb

        ha, hb = jax.lax.fori_loop(0, t_chunk, step,
                                   (h0[:half], h0[half:]), unroll=unroll)
        h_ref[...] = jnp.concatenate([ha, hb], axis=0)
    else:
        def step(t, h_prev):
            h_new = jnp.tanh(z_ref[t] + jnp.dot(
                h_prev, whh, preferred_element_type=jnp.float32))
            hs_ref[t] = h_new
            return h_new

        h_ref[...] = jax.lax.fori_loop(0, t_chunk, step, h0, unroll=unroll)

    # One transposed writeback per chunk (VMEM-local) so the HBM output is
    # already batch-major and the wrapper needs no extra full-array transpose.
    out_ref[...] = jnp.transpose(hs_ref[...], (1, 0, 2)).astype(out_ref.dtype)


def rnn_forward(x, w_ih, w_hh, b_ih, b_hh, *, time_chunk=128, batch_block=None,
                vmem_budget_bytes=40 * 1024 * 1024):
    """Forward of nn.RNN(input_size, hidden_size, batch_first=True), h_0 = 0.

    x: (B, S, I) float32  ->  out: (B, S, H) float32 (h_t for every t).
    """
    B, S, I = x.shape
    H = w_ih.shape[0]

    b_pad = _round_up(B, 8)          # sublane-aligned batch
    h_pad = _round_up(H, 128)        # lane-dense hidden dim
    i_pad = _round_up(I, 128)        # lane-dense input dim

    b_block = _default_batch_block(b_pad) if batch_block is None else batch_block
    if b_block <= 0 or b_pad % b_block != 0 or b_block % 8 != 0:
        b_block = b_pad

    t_chunk = _pick_time_chunk(time_chunk, S, b_block, i_pad, h_pad,
                               vmem_budget_bytes)
    s_pad = _round_up(S, t_chunk)
    unroll = max(1, min(8, t_chunk))

    f32 = jnp.float32
    # Small time-major layout pass over x only (x is much smaller than z/out);
    # the big arrays (z, out) never take extra HBM passes.
    x_tm = jnp.transpose(x.astype(f32), (1, 0, 2))              # (S, B, I)
    x_tm = jnp.pad(x_tm, ((0, s_pad - S), (0, b_pad - B), (0, i_pad - I)))
    wih_t = jnp.pad(w_ih.T.astype(f32), ((0, i_pad - I), (0, h_pad - H)))
    whh_t = jnp.pad(w_hh.T.astype(f32), ((0, h_pad - H), (0, h_pad - H)))
    bias = jnp.pad((b_ih + b_hh).astype(f32), (0, h_pad - H)).reshape(1, h_pad)

    interleave = (b_block >= 16) and (b_block % 16 == 0)
    grid = (b_pad // b_block, s_pad // t_chunk)
    vmem_limit = min(_vmem_need_bytes(t_chunk, b_block, i_pad, h_pad)
                     + (4 << 20), 128 * 1024 * 1024)

    out_padded = pl.pallas_call(
        functools.partial(_rnn_chunk_kernel, t_chunk=t_chunk,
                          interleave=interleave, unroll=unroll),
        out_shape=jax.ShapeDtypeStruct((b_pad, s_pad, h_pad), f32),
        grid_spec=pltpu.PrefetchScalarGridSpec(
            num_scalar_prefetch=0,
            grid=grid,
            in_specs=[
                pl.BlockSpec((t_chunk, b_block, i_pad), lambda b, c: (c, b, 0)),
                pl.BlockSpec((i_pad, h_pad), lambda b, c: (0, 0)),
                pl.BlockSpec((1, h_pad), lambda b, c: (0, 0)),
                pl.BlockSpec((h_pad, h_pad), lambda b, c: (0, 0)),
            ],
            out_specs=pl.BlockSpec((b_block, t_chunk, h_pad),
                                   lambda b, c: (b, c, 0)),
            scratch_shapes=[
                pltpu.VMEM((b_block, h_pad), f32),             # h carry
                pltpu.VMEM((t_chunk, b_block, h_pad), f32),    # z chunk
                pltpu.VMEM((t_chunk, b_block, h_pad), f32),    # staged h_t
            ],
        ),
        compiler_params=pltpu.CompilerParams(
            # Batch blocks independent (v7x megacore); time axis is the
            # sequential recurrence (carry reset at program_id(1) == 0).
            dimension_semantics=("parallel", "arbitrary"),
            vmem_limit_bytes=int(vmem_limit),
        ),
    )(x_tm, wih_t, bias, whh_t)

    return out_padded[:B, :S, :H]


def rnn_reference(x, w_ih, w_hh, b_ih, b_hh):
    """Pure-JAX reference matching torch.nn.RNN(batch_first=True) semantics."""
    B, _, _ = x.shape
    H = w_ih.shape[0]

    def step(h, x_t):
        h_new = jnp.tanh(x_t @ w_ih.T + b_ih + h @ w_hh.T + b_hh)
        return h_new, h_new

    h0 = jnp.zeros((B, H), jnp.float32)
    _, outs = jax.lax.scan(step, h0, jnp.transpose(x, (1, 0, 2)))
    return jnp.transpose(outs, (1, 0, 2))


if __name__ == "__main__":
    # TorchRNN(input_size, hidden_size); fc / CrossEntropyLoss are not used in
    # forward(x), so only the RNN hidden-state sequence is produced.
    key = jax.random.PRNGKey(0)

    def make_params(k, I, H):
        k1, k2, k3, k4 = jax.random.split(k, 4)
        bound = 1.0 / jnp.sqrt(jnp.float32(H))
        w_ih = jax.random.uniform(k1, (H, I), jnp.float32, -bound, bound)
        w_hh = jax.random.uniform(k2, (H, H), jnp.float32, -bound, bound)
        b_ih = jax.random.uniform(k3, (H,), jnp.float32, -bound, bound)
        b_hh = jax.random.uniform(k4, (H,), jnp.float32, -bound, bound)
        return w_ih, w_hh, b_ih, b_hh

    # --- Case 1: nominal small shape (B=2, S=8, I=16, H=32). ---
    k0, kx = jax.random.split(key)
    B, S, I, H = 2, 8, 16, 32
    x = jax.random.normal(kx, (B, S, I), dtype=jnp.float32)
    params = make_params(k0, I, H)
    ref = rnn_reference(x, *params)
    out = jax.block_until_ready(rnn_forward(x, *params))
    assert out.shape == (B, S, H)
    assert jnp.allclose(out, ref, atol=1e-4, rtol=1e-4), float(
        jnp.max(jnp.abs(out - ref)))

    # --- Case 2: multi-chunk time carry + interleaved half-batch chains. ---
    k1, kx2 = jax.random.split(k0)
    B2, S2, I2, H2 = 16, 40, 16, 48
    x2 = jax.random.normal(kx2, (B2, S2, I2), dtype=jnp.float32)
    params2 = make_params(k1, I2, H2)
    ref2 = rnn_reference(x2, *params2)
    out2 = jax.block_until_ready(rnn_forward(x2, *params2, time_chunk=16))
    assert out2.shape == (B2, S2, H2)
    assert jnp.allclose(out2, ref2, atol=1e-4, rtol=1e-4), float(
        jnp.max(jnp.abs(out2 - ref2)))

    # --- Case 3: explicit batch-axis split (the v7x megacore layout). ---
    out3 = jax.block_until_ready(
        rnn_forward(x2, *params2, time_chunk=16, batch_block=8))
    assert jnp.allclose(out3, ref2, atol=1e-4, rtol=1e-4), float(
        jnp.max(jnp.abs(out3 - ref2)))

    print("KERNEL_OK")
</pallas_src>

<mosaic_0001>
module attributes {stable_mosaic.version = 11 : i64} {
  func.func @_rnn_chunk_kernel(%arg0: i32, %arg1: i32, %arg2: memref<8x8x128xf32, #tpu.memory_space<vmem>>, %arg3: memref<128x128xf32, #tpu.memory_space<vmem>>, %arg4: memref<1x128xf32, #tpu.memory_space<vmem>>, %arg5: memref<128x128xf32, #tpu.memory_space<vmem>>, %arg6: memref<8x8x128xf32, #tpu.memory_space<vmem>>, %arg7: memref<8x128xf32, #tpu.memory_space<vmem>>, %arg8: memref<8x8x128xf32, #tpu.memory_space<vmem>>, %arg9: memref<8x8x128xf32, #tpu.memory_space<vmem>>) attributes {dimension_semantics = [#tpu.dimension_semantics<parallel>, #tpu.dimension_semantics<arbitrary>], iteration_bounds = array<i64: 1, 1>, scalar_prefetch = 0 : i64, scratch_operands = 3 : i64, tpu.core_type = #tpu.core_type<tc>, window_params = [{transform_indices = @transform_0, window_bounds = array<i64: 8, 8, 128>}, {pipeline_mode = #tpu.pipeline_mode<synchronous>, transform_indices = @transform_1, window_bounds = array<i64: 128, 128>}, {pipeline_mode = #tpu.pipeline_mode<synchronous>, transform_indices = @transform_2, window_bounds = array<i64: 1, 128>}, {pipeline_mode = #tpu.pipeline_mode<synchronous>, transform_indices = @transform_3, window_bounds = array<i64: 128, 128>}, {transform_indices = @transform_4, window_bounds = array<i64: 8, 8, 128>}]} {
    %c0_i32 = arith.constant 0 : i32
    %0 = arith.cmpi eq, %arg1, %c0_i32 : i32
    %1 = arith.extui %0 : i1 to i32
    %c0_i32_0 = arith.constant 0 : i32
    %2 = arith.cmpi ne, %1, %c0_i32_0 : i32
    scf.if %2 {
      %cst_63 = arith.constant 0.000000e+00 : f32
      %98 = vector.broadcast %cst_63 : f32 to vector<8x128xf32>
      %c0_64 = arith.constant 0 : index
      %c0_65 = arith.constant 0 : index
      %99 = vector.load %arg7[%c0_64, %c0_65] : memref<8x128xf32, #tpu.memory_space<vmem>>, vector<8x128xf32>
      tpu.vector_store %arg7[%c0_64, %c0_65], %98 {strides = array<i32>} : memref<8x128xf32, #tpu.memory_space<vmem>>, vector<8x128xf32>,
    } else {
    }
    %c0 = arith.constant 0 : index
    %c0_1 = arith.constant 0 : index
    %c0_2 = arith.constant 0 : index
    %3 = vector.load %arg2[%c0, %c0_1, %c0_2] : memref<8x8x128xf32, #tpu.memory_space<vmem>>, vector<8x8x128xf32>
    %4 = vector.shape_cast %3 : vector<8x8x128xf32> to vector<64x128xf32>
    %c0_3 = arith.constant 0 : index
    %c0_4 = arith.constant 0 : index
    %5 = vector.load %arg3[%c0_3, %c0_4] : memref<128x128xf32, #tpu.memory_space<vmem>>, vector<128x128xf32>
    %cst = arith.constant dense<0.000000e+00> : vector<64x128xf32>
    %6 = tpu.matmul %4, %5, %cst {dimension_numbers = #tpu.dot_dimension_numbers<[1], [0], [0], [1], [0, 0, 1, 1], [], []>} : vector<64x128xf32>, vector<128x128xf32>, vector<64x128xf32> -> vector<64x128xf32>
    %c0_5 = arith.constant 0 : index
    %c0_6 = arith.constant 0 : index
    %7 = vector.load %arg4[%c0_5, %c0_6] : memref<1x128xf32, #tpu.memory_space<vmem>>, vector<1x128xf32>
    %8 = vector.broadcast %7 : vector<1x128xf32> to vector<64x128xf32>
    %9 = arith.addf %6, %8 : vector<64x128xf32>
    %10 = vector.shape_cast %9 : vector<64x128xf32> to vector<8x8x128xf32>
    %c0_7 = arith.constant 0 : index
    %c0_8 = arith.constant 0 : index
    %c0_9 = arith.constant 0 : index
    %11 = vector.load %arg8[%c0_7, %c0_8, %c0_9] : memref<8x8x128xf32, #tpu.memory_space<vmem>>, vector<8x8x128xf32>
    tpu.vector_store %arg8[%c0_7, %c0_8, %c0_9], %10 {strides = array<i32>} : memref<8x8x128xf32, #tpu.memory_space<vmem>>, vector<8x8x128xf32>,
    %c0_10 = arith.constant 0 : index
    %c0_11 = arith.constant 0 : index
    %12 = vector.load %arg5[%c0_10, %c0_11] : memref<128x128xf32, #tpu.memory_space<vmem>>, vector<128x128xf32>
    %c0_12 = arith.constant 0 : index
    %c0_13 = arith.constant 0 : index
    %13 = vector.load %arg7[%c0_12, %c0_13] : memref<8x128xf32, #tpu.memory_space<vmem>>, vector<8x128xf32>
    %c0_i32_14 = arith.constant 0 : i32
    %14 = arith.index_cast %c0_i32_14 : i32 to index
    %c0_15 = arith.constant 0 : index
    %c0_16 = arith.constant 0 : index
    %15 = vector.load %arg8[%14, %c0_15, %c0_16] : memref<8x8x128xf32, #tpu.memory_space<vmem>>, vector<1x8x128xf32>
    %16 = vector.shape_cast %15 : vector<1x8x128xf32> to vector<8x128xf32>
    %cst_17 = arith.constant dense<0.000000e+00> : vector<8x128xf32>
    %17 = tpu.matmul %13, %12, %cst_17 {dimension_numbers = #tpu.dot_dimension_numbers<[1], [0], [0], [1], [0, 0, 1, 1], [], []>} : vector<8x128xf32>, vector<128x128xf32>, vector<8x128xf32> -> vector<8x128xf32>
    %18 = arith.addf %16, %17 : vector<8x128xf32>
    %19 = math.tanh %18 : vector<8x128xf32>
    %20 = arith.index_cast %c0_i32_14 : i32 to index
    %c0_18 = arith.constant 0 : index
    %c0_19 = arith.constant 0 : index
    %21 = vector.load %arg9[%20, %c0_18, %c0_19] : memref<8x8x128xf32, #tpu.memory_space<vmem>>, vector<1x8x128xf32>
    %22 = vector.shape_cast %21 : vector<1x8x128xf32> to vector<8x128xf32>
    %23 = vector.shape_cast %19 : vector<8x128xf32> to vector<1x8x128xf32>
    tpu.vector_store %arg9[%20, %c0_18, %c0_19], %23 {strides = array<i32>} : memref<8x8x128xf32, #tpu.memory_space<vmem>>, vector<1x8x128xf32>,
    %c1_i32 = arith.constant 1 : i32
    %24 = arith.index_cast %c1_i32 : i32 to index
    %c0_20 = arith.constant 0 : index
    %c0_21 = arith.constant 0 : index
    %25 = vector.load %arg8[%24, %c0_20, %c0_21] : memref<8x8x128xf32, #tpu.memory_space<vmem>>, vector<1x8x128xf32>
    %26 = vector.shape_cast %25 : vector<1x8x128xf32> to vector<8x128xf32>
    %cst_22 = arith.constant dense<0.000000e+00> : vector<8x128xf32>
    %27 = tpu.matmul %19, %12, %cst_22 {dimension_numbers = #tpu.dot_dimension_numbers<[1], [0], [0], [1], [0, 0, 1, 1], [], []>} : vector<8x128xf32>, vector<128x128xf32>, vector<8x128xf32> -> vector<8x128xf32>
    %28 = arith.addf %26, %27 : vector<8x128xf32>
    %29 = math.tanh %28 : vector<8x128xf32>
    %30 = arith.index_cast %c1_i32 : i32 to index
    %c0_23 = arith.constant 0 : index
    %c0_24 = arith.constant 0 : index
    %31 = vector.load %arg9[%30, %c0_23, %c0_24] : memref<8x8x128xf32, #tpu.memory_space<vmem>>, vector<1x8x128xf32>
    %32 = vector.shape_cast %31 : vector<1x8x128xf32> to vector<8x128xf32>
    %33 = vector.shape_cast %29 : vector<8x128xf32> to vector<1x8x128xf32>
    tpu.vector_store %arg9[%30, %c0_23, %c0_24], %33 {strides = array<i32>} : memref<8x8x128xf32, #tpu.memory_space<vmem>>, vector<1x8x128xf32>,
    %c2_i32 = arith.constant 2 : i32
    %34 = arith.index_cast %c2_i32 : i32 to index
    %c0_25 = arith.constant 0 : index
    %c0_26 = arith.constant 0 : index
    %35 = vector.load %arg8[%34, %c0_25, %c0_26] : memref<8x8x128xf32, #tpu.memory_space<vmem>>, vector<1x8x128xf32>
    %36 = vector.shape_cast %35 : vector<1x8x128xf32> to vector<8x128xf32>
    %cst_27 = arith.constant dense<0.000000e+00> : vector<8x128xf32>
    %37 = tpu.matmul %29, %12, %cst_27 {dimension_numbers = #tpu.dot_dimension_numbers<[1], [0], [0], [1], [0, 0, 1, 1], [], []>} : vector<8x128xf32>, vector<128x128xf32>, vector<8x128xf32> -> vector<8x128xf32>
    %38 = arith.addf %36, %37 : vector<8x128xf32>
    %39 = math.tanh %38 : vector<8x128xf32>
    %40 = arith.index_cast %c2_i32 : i32 to index
    %c0_28 = arith.constant 0 : index
    %c0_29 = arith.constant 0 : index
    %41 = vector.load %arg9[%40, %c0_28, %c0_29] : memref<8x8x128xf32, #tpu.memory_space<vmem>>, vector<1x8x128xf32>
    %42 = vector.shape_cast %41 : vector<1x8x128xf32> to vector<8x128xf32>
    %43 = vector.shape_cast %39 : vector<8x128xf32> to vector<1x8x128xf32>
    tpu.vector_store %arg9[%40, %c0_28, %c0_29], %43 {strides = array<i32>} : memref<8x8x128xf32, #tpu.memory_space<vmem>>, vector<1x8x128xf32>,
    %c3_i32 = arith.constant 3 : i32
    %44 = arith.index_cast %c3_i32 : i32 to index
    %c0_30 = arith.constant 0 : index
    %c0_31 = arith.constant 0 : index
    %45 = vector.load %arg8[%44, %c0_30, %c0_31] : memref<8x8x128xf32, #tpu.memory_space<vmem>>, vector<1x8x128xf32>
    %46 = vector.shape_cast %45 : vector<1x8x128xf32> to vector<8x128xf32>
    %cst_32 = arith.constant dense<0.000000e+00> : vector<8x128xf32>
    %47 = tpu.matmul %39, %12, %cst_32 {dimension_numbers = #tpu.dot_dimension_numbers<[1], [0], [0], [1], [0, 0, 1, 1], [], []>} : vector<8x128xf32>, vector<128x128xf32>, vector<8x128xf32> -> vector<8x128xf32>
    %48 = arith.addf %46, %47 : vector<8x128xf32>
    %49 = math.tanh %48 : vector<8x128xf32>
    %50 = arith.index_cast %c3_i32 : i32 to index
    %c0_33 = arith.constant 0 : index
    %c0_34 = arith.constant 0 : index
    %51 = vector.load %arg9[%50, %c0_33, %c0_34] : memref<8x8x128xf32, #tpu.memory_space<vmem>>, vector<1x8x128xf32>
    %52 = vector.shape_cast %51 : vector<1x8x128xf32> to vector<8x128xf32>
    %53 = vector.shape_cast %49 : vector<8x128xf32> to vector<1x8x128xf32>
    tpu.vector_store %arg9[%50, %c0_33, %c0_34], %53 {strides = array<i32>} : memref<8x8x128xf32, #tpu.memory_space<vmem>>, vector<1x8x128xf32>,
    %c4_i32 = arith.constant 4 : i32
    %54 = arith.index_cast %c4_i32 : i32 to index
    %c0_35 = arith.constant 0 : index
    %c0_36 = arith.constant 0 : index
    %55 = vector.load %arg8[%54, %c0_35, %c0_36] : memref<8x8x128xf32, #tpu.memory_space<vmem>>, vector<1x8x128xf32>
    %56 = vector.shape_cast %55 : vector<1x8x128xf32> to vector<8x128xf32>
    %cst_37 = arith.constant dense<0.000000e+00> : vector<8x128xf32>
    %57 = tpu.matmul %49, %12, %cst_37 {dimension_numbers = #tpu.dot_dimension_numbers<[1], [0], [0], [1], [0, 0, 1, 1], [], []>} : vector<8x128xf32>, vector<128x128xf32>, vector<8x128xf32> -> vector<8x128xf32>
    %58 = arith.addf %56, %57 : vector<8x128xf32>
    %59 = math.tanh %58 : vector<8x128xf32>
    %60 = arith.index_cast %c4_i32 : i32 to index
    %c0_38 = arith.constant 0 : index
    %c0_39 = arith.constant 0 : index
    %61 = vector.load %arg9[%60, %c0_38, %c0_39] : memref<8x8x128xf32, #tpu.memory_space<vmem>>, vector<1x8x128xf32>
    %62 = vector.shape_cast %61 : vector<1x8x128xf32> to vector<8x128xf32>
    %63 = vector.shape_cast %59 : vector<8x128xf32> to vector<1x8x128xf32>
    tpu.vector_store %arg9[%60, %c0_38, %c0_39], %63 {strides = array<i32>} : memref<8x8x128xf32, #tpu.memory_space<vmem>>, vector<1x8x128xf32>,
    %c5_i32 = arith.constant 5 : i32
    %64 = arith.index_cast %c5_i32 : i32 to index
    %c0_40 = arith.constant 0 : index
    %c0_41 = arith.constant 0 : index
    %65 = vector.load %arg8[%64, %c0_40, %c0_41] : memref<8x8x128xf32, #tpu.memory_space<vmem>>, vector<1x8x128xf32>
    %66 = vector.shape_cast %65 : vector<1x8x128xf32> to vector<8x128xf32>
    %cst_42 = arith.constant dense<0.000000e+00> : vector<8x128xf32>
    %67 = tpu.matmul %59, %12, %cst_42 {dimension_numbers = #tpu.dot_dimension_numbers<[1], [0], [0], [1], [0, 0, 1, 1], [], []>} : vector<8x128xf32>, vector<128x128xf32>, vector<8x128xf32> -> vector<8x128xf32>
    %68 = arith.addf %66, %67 : vector<8x128xf32>
    %69 = math.tanh %68 : vector<8x128xf32>
    %70 = arith.index_cast %c5_i32 : i32 to index
    %c0_43 = arith.constant 0 : index
    %c0_44 = arith.constant 0 : index
    %71 = vector.load %arg9[%70, %c0_43, %c0_44] : memref<8x8x128xf32, #tpu.memory_space<vmem>>, vector<1x8x128xf32>
    %72 = vector.shape_cast %71 : vector<1x8x128xf32> to vector<8x128xf32>
    %73 = vector.shape_cast %69 : vector<8x128xf32> to vector<1x8x128xf32>
    tpu.vector_store %arg9[%70, %c0_43, %c0_44], %73 {strides = array<i32>} : memref<8x8x128xf32, #tpu.memory_space<vmem>>, vector<1x8x128xf32>,
    %c6_i32 = arith.constant 6 : i32
    %74 = arith.index_cast %c6_i32 : i32 to index
    %c0_45 = arith.constant 0 : index
    %c0_46 = arith.constant 0 : index
    %75 = vector.load %arg8[%74, %c0_45, %c0_46] : memref<8x8x128xf32, #tpu.memory_space<vmem>>, vector<1x8x128xf32>
    %76 = vector.shape_cast %75 : vector<1x8x128xf32> to vector<8x128xf32>
    %cst_47 = arith.constant dense<0.000000e+00> : vector<8x128xf32>
    %77 = tpu.matmul %69, %12, %cst_47 {dimension_numbers = #tpu.dot_dimension_numbers<[1], [0], [0], [1], [0, 0, 1, 1], [], []>} : vector<8x128xf32>, vector<128x128xf32>, vector<8x128xf32> -> vector<8x128xf32>
    %78 = arith.addf %76, %77 : vector<8x128xf32>
    %79 = math.tanh %78 : vector<8x128xf32>
    %80 = arith.index_cast %c6_i32 : i32 to index
    %c0_48 = arith.constant 0 : index
    %c0_49 = arith.constant 0 : index
    %81 = vector.load %arg9[%80, %c0_48, %c0_49] : memref<8x8x128xf32, #tpu.memory_space<vmem>>, vector<1x8x128xf32>
    %82 = vector.shape_cast %81 : vector<1x8x128xf32> to vector<8x128xf32>
    %83 = vector.shape_cast %79 : vector<8x128xf32> to vector<1x8x128xf32>
    tpu.vector_store %arg9[%80, %c0_48, %c0_49], %83 {strides = array<i32>} : memref<8x8x128xf32, #tpu.memory_space<vmem>>, vector<1x8x128xf32>,
    %c7_i32 = arith.constant 7 : i32
    %84 = arith.index_cast %c7_i32 : i32 to index
    %c0_50 = arith.constant 0 : index
    %c0_51 = arith.constant 0 : index
    %85 = vector.load %arg8[%84, %c0_50, %c0_51] : memref<8x8x128xf32, #tpu.memory_space<vmem>>, vector<1x8x128xf32>
    %86 = vector.shape_cast %85 : vector<1x8x128xf32> to vector<8x128xf32>
    %cst_52 = arith.constant dense<0.000000e+00> : vector<8x128xf32>
    %87 = tpu.matmul %79, %12, %cst_52 {dimension_numbers = #tpu.dot_dimension_numbers<[1], [0], [0], [1], [0, 0, 1, 1], [], []>} : vector<8x128xf32>, vector<128x128xf32>, vector<8x128xf32> -> vector<8x128xf32>
    %88 = arith.addf %86, %87 : vector<8x128xf32>
    %89 = math.tanh %88 : vector<8x128xf32>
    %90 = arith.index_cast %c7_i32 : i32 to index
    %c0_53 = arith.constant 0 : index
    %c0_54 = arith.constant 0 : index
    %91 = vector.load %arg9[%90, %c0_53, %c0_54] : memref<8x8x128xf32, #tpu.memory_space<vmem>>, vector<1x8x128xf32>
    %92 = vector.shape_cast %91 : vector<1x8x128xf32> to vector<8x128xf32>
    %93 = vector.shape_cast %89 : vector<8x128xf32> to vector<1x8x128xf32>
    tpu.vector_store %arg9[%90, %c0_53, %c0_54], %93 {strides = array<i32>} : memref<8x8x128xf32, #tpu.memory_space<vmem>>, vector<1x8x128xf32>,
    %c8_i32 = arith.constant 8 : i32
    %c0_55 = arith.constant 0 : index
    %c0_56 = arith.constant 0 : index
    %94 = vector.load %arg7[%c0_55, %c0_56] : memref<8x128xf32, #tpu.memory_space<vmem>>, vector<8x128xf32>
    tpu.vector_store %arg7[%c0_55, %c0_56], %89 {strides = array<i32>} : memref<8x128xf32, #tpu.memory_space<vmem>>, vector<8x128xf32>,
    %c0_57 = arith.constant 0 : index
    %c0_58 = arith.constant 0 : index
    %c0_59 = arith.constant 0 : index
    %95 = vector.load %arg9[%c0_57, %c0_58, %c0_59] : memref<8x8x128xf32, #tpu.memory_space<vmem>>, vector<8x8x128xf32>
    %96 = tpu.transpose %95, [1, 0, 2] : vector<8x8x128xf32> -> vector<8x8x128xf32>
    %c0_60 = arith.constant 0 : index
    %c0_61 = arith.constant 0 : index
    %c0_62 = arith.constant 0 : index
    %97 = vector.load %arg6[%c0_60, %c0_61, %c0_62] : memref<8x8x128xf32, #tpu.memory_space<vmem>>, vector<8x8x128xf32>
    tpu.vector_store %arg6[%c0_60, %c0_61, %c0_62], %96 {strides = array<i32>} : memref<8x8x128xf32, #tpu.memory_space<vmem>>, vector<8x8x128xf32>,
    return
  }
  func.func @transform_0(%arg0: i32, %arg1: i32) -> (i32, i32, i32) {
    %c0_i32 = arith.constant 0 : i32
    %c0_i32_0 = arith.constant 0 : i32
    return %arg1, %arg0, %c0_i32 : i32, i32, i32
  }
  func.func @transform_1(%arg0: i32, %arg1: i32) -> (i32, i32) {
    %c0_i32 = arith.constant 0 : i32
    %c0_i32_0 = arith.constant 0 : i32
    %c0_i32_1 = arith.constant 0 : i32
    return %c0_i32, %c0_i32_0 : i32, i32
  }
  func.func @transform_2(%arg0: i32, %arg1: i32) -> (i32, i32) {
    %c0_i32 = arith.constant 0 : i32
    %c0_i32_0 = arith.constant 0 : i32
    %c0_i32_1 = arith.constant 0 : i32
    return %c0_i32, %c0_i32_0 : i32, i32
  }
  func.func @transform_3(%arg0: i32, %arg1: i32) -> (i32, i32) {
    %c0_i32 = arith.constant 0 : i32
    %c0_i32_0 = arith.constant 0 : i32
    %c0_i32_1 = arith.constant 0 : i32
    return %c0_i32, %c0_i32_0 : i32, i32
  }
  func.func @transform_4(%arg0: i32, %arg1: i32) -> (i32, i32, i32) {
    %c0_i32 = arith.constant 0 : i32
    %c0_i32_0 = arith.constant 0 : i32
    return %arg0, %arg1, %c0_i32 : i32, i32, i32
  }
}

</mosaic_0001>

<llo_original>
// kernel: tpu_custom_call.1
$region0: #{tpu_custom_call.1}
  #allocation0 [shape = 'u32[]', space=smem, size = 0x4, offset = 0x4, fixed_abs, tag = 'smem constant byte address 0x4 - core index']
  #allocation1 [shape = 'u32[72,128]{1,0:T(1,128)}', space=vmem, size = 0x9000, scoped, tag = 'internal scratch']
  #allocation2 [shape = 'f32[8,128]{1,0:T(8,128)}', space=vmem, size = 0x1000, scoped, tag = 'scratch operand']
  #allocation3 [shape = 'f32[8,8,128]{2,1,0:T(8,128)}', space=vmem, size = 0x8000, scoped, tag = 'scratch operand']
  #allocation4 [shape = 'f32[8,8,128]{2,1,0:T(8,128)}', space=vmem, size = 0x8000, scoped, tag = 'scratch operand']
  %s0 = inlined_call_operand.hbm [shape: f32[8,8,128], index: 0, kind: input, shape index: {}]
  %s1 = inlined_call_operand.hbm [shape: f32[128,128], index: 1, kind: input, shape index: {}]
  %s2 = inlined_call_operand.vmem [shape: f32[1,128], index: 2, kind: input, shape index: {}]
  %s3 = inlined_call_operand.hbm [shape: f32[128,128], index: 3, kind: input, shape index: {}]
  %s4 = inlined_call_operand.hbm [shape: f32[8,8,128], index: 4, kind: output, shape index: {}]
  %s5 = sld [smem:[#allocation0]]
  $region42: #{tpu_custom_call.1} parent=0
    _
  %s7 = ssub.s32 1, %s5
  %s8 = scalar_select 0, %s7, %s5
  $region1: #{tpu_custom_call.1} parent=0
    #allocation5 [shape = 'u8[32768]{0}', space=vmem, size = 0x8000, scoped, tag = 'input window, operand 0, single buffered']
    #allocation6 [shape = 's32[1]{0}', space=sflag, size = 0x4, scoped, tag = 'scoped memory for tpu_custom_call.1']
    #allocation7 [shape = 's32[1]{0}', space=sflag, size = 0x4, scoped, tag = 'scoped memory for tpu_custom_call.1']
    #allocation8 [shape = 'u8[65536]{0}', space=vmem, size = 0x10000, scoped, tag = 'input window, operand 1, single buffered']
    #allocation9 [shape = 's32[1]{0}', space=sflag, size = 0x4, scoped, tag = 'scoped memory for tpu_custom_call.1']
    #allocation10 [shape = 'u8[65536]{0}', space=vmem, size = 0x10000, scoped, tag = 'input window, operand 3, single buffered']
    #allocation11 [shape = 'u8[32768]{0}', space=vmem, size = 0x8000, scoped, tag = 'output window, operand 0, single buffered']
    %9 = vsyncpa [#allocation6], 0
    %10 = vsyncpa [#allocation9], 0
    %11 = vsyncpa [#allocation7], 0
    // Predicated region
    $region2: #{tpu_custom_call.1} parent=1 // pred_check
      _
    $region3: #{tpu_custom_call.1} parent=1 // pred_check_branch
      %13 = sbr.rel (0) target = $region5
    $region4: #{tpu_custom_call.1} parent=1 // pred_region
      %15 = vsyncadd [#allocation6], 0
      %s16 = sshll.u32 %s0, 4
      %s17 = int_to_ptr.hbm [resolvable:$true] %s16
      %s18 = sshll.u32 [#allocation5], 4
      %s19 = int_to_ptr.vmem [resolvable:$true] %s18
      %24 = dma.hbm_to_vmem [thread:$0]  %s17, 1024, %s19, [#allocation6], 128, 128, 8
    $region5: #{tpu_custom_call.1} parent=1 // pred_fallthru
      _
    // Predicated region
    $region6: #{tpu_custom_call.1} parent=1 // pred_check
      _
    $region7: #{tpu_custom_call.1} parent=1 // pred_check_branch
      %26 = sbr.rel (0) target = $region9
    $region8: #{tpu_custom_call.1} parent=1 // pred_region
      %28 = vsyncadd [#allocation9], 0
      %s29 = sshll.u32 %s1, 4
      %s30 = int_to_ptr.hbm [resolvable:$true] %s29
      %s31 = sshll.u32 [#allocation8], 4
      %s32 = int_to_ptr.vmem [resolvable:$true] %s31
      %37 = dma.hbm_to_vmem [thread:$0]  %s30, 2048, %s32, [#allocation9], 128, 128, 8
    $region9: #{tpu_custom_call.1} parent=1 // pred_fallthru
      _
    // Predicated region
    $region10: #{tpu_custom_call.1} parent=1 // pred_check
      _
    $region11: #{tpu_custom_call.1} parent=1 // pred_check_branch
      %39 = sbr.rel (0) target = $region13
    $region12: #{tpu_custom_call.1} parent=1 // pred_region
      _
    $region13: #{tpu_custom_call.1} parent=1 // pred_fallthru
      _
    // Predicated region
    $region14: #{tpu_custom_call.1} parent=1 // pred_check
      _
    $region15: #{tpu_custom_call.1} parent=1 // pred_check_branch
      %41 = sbr.rel (0) target = $region17
    $region16: #{tpu_custom_call.1} parent=1 // pred_region
      %43 = vsyncadd [#allocation9], 0
      %s44 = sshll.u32 %s3, 4
      %s45 = int_to_ptr.hbm [resolvable:$true] %s44
      %s46 = sshll.u32 [#allocation10], 4
      %s47 = int_to_ptr.vmem [resolvable:$true] %s46
      %52 = dma.hbm_to_vmem [thread:$0]  %s45, 2048, %s47, [#allocation9], 128, 128, 8
    $region17: #{tpu_custom_call.1} parent=1 // pred_fallthru
      _
    // Predicated region
    $region18: #{tpu_custom_call.1} parent=1 // pred_check
      _
    $region19: #{tpu_custom_call.1} parent=1 // pred_check_branch
      %54 = sbr.rel (0) target = $region21
    $region20: #{tpu_custom_call.1} parent=1 // pred_region
      %56 = dma.done [#allocation6], 1024
    $region21: #{tpu_custom_call.1} parent=1 // pred_fallthru
      _
    // Predicated region
    $region22: #{tpu_custom_call.1} parent=1 // pred_check
      _
    $region23: #{tpu_custom_call.1} parent=1 // pred_check_branch
      %58 = sbr.rel (0) target = $region25
    $region24: #{tpu_custom_call.1} parent=1 // pred_region
      %60 = dma.done [#allocation9], 2048
    $region25: #{tpu_custom_call.1} parent=1 // pred_fallthru
      _
    // Predicated region
    $region26: #{tpu_custom_call.1} parent=1 // pred_check
      _
    $region27: #{tpu_custom_call.1} parent=1 // pred_check_branch
      %62 = sbr.rel (0) target = $region29
    $region28: #{tpu_custom_call.1} parent=1 // pred_region
      %64 = dma.done [#allocation9], 2048
    $region29: #{tpu_custom_call.1} parent=1 // pred_fallthru
      _
    %p65 = scmp.eq.s32.totalorder 0, 0
    // Predicated region
    $region30: #{tpu_custom_call.1} parent=1 // pred_check
      %p66 = pneg %p65
    $region31: #{tpu_custom_call.1} parent=1 // pred_check_branch
      %68 = sbr.rel (%p66) target = $region33
    $region32: #{tpu_custom_call.1} parent=1 // pred_region
      %69 = vst [vmem:[#allocation2] sm:$0xff] 0.0
    $region33: #{tpu_custom_call.1} parent=1 // pred_fallthru
      _
    %v70 = vld [vmem:[#allocation5] sm:$0xff]
    %v71 = vld [vmem:[#allocation5 + $0x8] sm:$0xff]
    %v72 = vld [vmem:[#allocation5 + $0x10] sm:$0xff]
    %v73 = vld [vmem:[#allocation5 + $0x18] sm:$0xff]
    %v74 = vld [vmem:[#allocation5 + $0x20] sm:$0xff]
    %v75 = vld [vmem:[#allocation5 + $0x28] sm:$0xff]
    %v76 = vld [vmem:[#allocation5 + $0x30] sm:$0xff]
    %v77 = vld [vmem:[#allocation5 + $0x38] sm:$0xff]
    %v78 = vld [vmem:[#allocation8] sm:$0xff]
    %v79 = vld [vmem:[#allocation8 + $0x8] sm:$0xff]
    %v80 = vld [vmem:[#allocation8 + $0x10] sm:$0xff]
    %v81 = vld [vmem:[#allocation8 + $0x18] sm:$0xff]
    %v82 = vld [vmem:[#allocation8 + $0x20] sm:$0xff]
    %v83 = vld [vmem:[#allocation8 + $0x28] sm:$0xff]
    %v84 = vld [vmem:[#allocation8 + $0x30] sm:$0xff]
    %v85 = vld [vmem:[#allocation8 + $0x38] sm:$0xff]
    %v86 = vld [vmem:[#allocation8 + $0x40] sm:$0xff]
    %v87 = vld [vmem:[#allocation8 + $0x48] sm:$0xff]
    %v88 = vld [vmem:[#allocation8 + $0x50] sm:$0xff]
    %v89 = vld [vmem:[#allocation8 + $0x58] sm:$0xff]
    %v90 = vld [vmem:[#allocation8 + $0x60] sm:$0xff]
    %v91 = vld [vmem:[#allocation8 + $0x68] sm:$0xff]
    %v92 = vld [vmem:[#allocation8 + $0x70] sm:$0xff]
    %v93 = vld [vmem:[#allocation8 + $0x78] sm:$0xff]
    %v94 = vld [vmem:[%s2] sm:$0x1]
    %v96 = vperm.slane %v94, 0
    %98 = vmatpush.msra.mxu0 %v93
    %99 = vmatpush.msra.mxu0 %v92
    %100 = vmatpush.msra.mxu0 %v91
    %101 = vmatpush.msra.mxu0 %v90
    %102 = vmatpush.msra.mxu0 %v89
    %103 = vmatpush.msra.mxu0 %v88
    %104 = vmatpush.msra.mxu0 %v87
    %105 = vmatpush.msra.mxu0 %v86
    %106 = vmatpush.msra.mxu0 %v85
    %107 = vmatpush.msra.mxu0 %v84
    %108 = vmatpush.msra.mxu0 %v83
    %109 = vmatpush.msra.mxu0 %v82
    %110 = vmatpush.msra.mxu0 %v81
    %111 = vmatpush.msra.mxu0 %v80
    %112 = vmatpush.msra.mxu0 %v79
    %113 = vmatpush.msra.mxu0 %v78
    %114 = vmatmul.f32.gmra.mxu0 %v70
    %v115 = vpop.f32.mrf.mxu0
    %v116 = vadd.f32 %v96, %v115
    %117 = vmatmul.f32.gmra.mxu0 %v71
    %v118 = vpop.f32.mrf.mxu0
    %v119 = vadd.f32 %v96, %v118
    %120 = vmatmul.f32.gmra.mxu0 %v72
    %v121 = vpop.f32.mrf.mxu0
    %v122 = vadd.f32 %v96, %v121
    %123 = vmatmul.f32.gmra.mxu0 %v73
    %v124 = vpop.f32.mrf.mxu0
    %v125 = vadd.f32 %v96, %v124
    %126 = vmatmul.f32.gmra.mxu0 %v74
    %v127 = vpop.f32.mrf.mxu0
    %v128 = vadd.f32 %v96, %v127
    %129 = vmatmul.f32.gmra.mxu0 %v75
    %v130 = vpop.f32.mrf.mxu0
    %v131 = vadd.f32 %v96, %v130
    %132 = vmatmul.f32.gmra.mxu0 %v76
    %v133 = vpop.f32.mrf.mxu0
    %v134 = vadd.f32 %v96, %v133
    %135 = vmatmul.f32.gmra.mxu0 %v77
    %v136 = vpop.f32.mrf.mxu0
    %v137 = vadd.f32 %v96, %v136
    %138 = vdwg.mxu0
    %139 = vst [vmem:[#allocation3] sm:$0xff] %v116
    %140 = vst [vmem:[#allocation3 + $0x8] sm:$0xff] %v119
    %141 = vst [vmem:[#allocation3 + $0x10] sm:$0xff] %v122
    %142 = vst [vmem:[#allocation3 + $0x18] sm:$0xff] %v125
    %143 = vst [vmem:[#allocation3 + $0x20] sm:$0xff] %v128
    %144 = vst [vmem:[#allocation3 + $0x28] sm:$0xff] %v131
    %145 = vst [vmem:[#allocation3 + $0x30] sm:$0xff] %v134
    %146 = vst [vmem:[#allocation3 + $0x38] sm:$0xff] %v137
    %v147 = vld [vmem:[#allocation10] sm:$0xff]
    %v148 = vld [vmem:[#allocation10 + $0x8] sm:$0xff]
    %v149 = vld [vmem:[#allocation10 + $0x10] sm:$0xff]
    %v150 = vld [vmem:[#allocation10 + $0x18] sm:$0xff]
    %v151 = vld [vmem:[#allocation10 + $0x20] sm:$0xff]
    %v152 = vld [vmem:[#allocation10 + $0x28] sm:$0xff]
    %v153 = vld [vmem:[#allocation10 + $0x30] sm:$0xff]
    %v154 = vld [vmem:[#allocation10 + $0x38] sm:$0xff]
    %v155 = vld [vmem:[#allocation10 + $0x40] sm:$0xff]
    %v156 = vld [vmem:[#allocation10 + $0x48] sm:$0xff]
    %v157 = vld [vmem:[#allocation10 + $0x50] sm:$0xff]
    %v158 = vld [vmem:[#allocation10 + $0x58] sm:$0xff]
    %v159 = vld [vmem:[#allocation10 + $0x60] sm:$0xff]
    %v160 = vld [vmem:[#allocation10 + $0x68] sm:$0xff]
    %v161 = vld [vmem:[#allocation10 + $0x70] sm:$0xff]
    %v162 = vld [vmem:[#allocation10 + $0x78] sm:$0xff]
    %v163 = vld [vmem:[#allocation2] sm:$0xff]
    %v164 = vld [vmem:[#allocation3] sm:$0xff]
    %165 = vmatpush.msra.mxu0 %v162
    %166 = vmatpush.msra.mxu0 %v161
    %167 = vmatpush.msra.mxu0 %v160
    %168 = vmatpush.msra.mxu0 %v159
    %169 = vmatpush.msra.mxu0 %v158
    %170 = vmatpush.msra.mxu0 %v157
    %171 = vmatpush.msra.mxu0 %v156
    %172 = vmatpush.msra.mxu0 %v155
    %173 = vmatpush.msra.mxu0 %v154
    %174 = vmatpush.msra.mxu0 %v153
    %175 = vmatpush.msra.mxu0 %v152
    %176 = vmatpush.msra.mxu0 %v151
    %177 = vmatpush.msra.mxu0 %v150
    %178 = vmatpush.msra.mxu0 %v149
    %179 = vmatpush.msra.mxu0 %v148
    %180 = vmatpush.msra.mxu0 %v147
    %181 = vmatmul.f32.gmra.mxu0 %v163
    %v182 = vpop.f32.mrf.mxu0
    %v183 = vadd.f32 0.0, %v182
    %184 = vdwg.mxu0
    %v185 = vadd.f32 %v164, %v183
    %v186 = vtanh.pop %v185
    %187 = vst [vmem:[#allocation4] sm:$0xff] %v186
    %s188 = scalar_lea.vmem [#allocation3], 8
    %v189 = vld [vmem:[%s188] sm:$0xff]
    %190 = vmatpush.msra.mxu0 %v162
    %191 = vmatpush.msra.mxu0 %v161
    %192 = vmatpush.msra.mxu0 %v160
    %193 = vmatpush.msra.mxu0 %v159
    %194 = vmatpush.msra.mxu0 %v158
    %195 = vmatpush.msra.mxu0 %v157
    %196 = vmatpush.msra.mxu0 %v156
    %197 = vmatpush.msra.mxu0 %v155
    %198 = vmatpush.msra.mxu0 %v154
    %199 = vmatpush.msra.mxu0 %v153
    %200 = vmatpush.msra.mxu0 %v152
    %201 = vmatpush.msra.mxu0 %v151
    %202 = vmatpush.msra.mxu0 %v150
    %203 = vmatpush.msra.mxu0 %v149
    %204 = vmatpush.msra.mxu0 %v148
    %205 = vmatpush.msra.mxu0 %v147
    %206 = vmatmul.f32.gmra.mxu0 %v186
    %v207 = vpop.f32.mrf.mxu0
    %v208 = vadd.f32 0.0, %v207
    %209 = vdwg.mxu0
    %v210 = vadd.f32 %v189, %v208
    %v211 = vtanh.pop %v210
    %s212 = scalar_lea.vmem [#allocation4], 8
    %213 = vst [vmem:[%s212] sm:$0xff] %v211
    %s214 = scalar_lea.vmem [#allocation3], 16
    %v215 = vld [vmem:[%s214] sm:$0xff]
    %216 = vmatpush.msra.mxu0 %v162
    %217 = vmatpush.msra.mxu0 %v161
    %218 = vmatpush.msra.mxu0 %v160
    %219 = vmatpush.msra.mxu0 %v159
    %220 = vmatpush.msra.mxu0 %v158
    %221 = vmatpush.msra.mxu0 %v157
    %222 = vmatpush.msra.mxu0 %v156
    %223 = vmatpush.msra.mxu0 %v155
    %224 = vmatpush.msra.mxu0 %v154
    %225 = vmatpush.msra.mxu0 %v153
    %226 = vmatpush.msra.mxu0 %v152
    %227 = vmatpush.msra.mxu0 %v151
    %228 = vmatpush.msra.mxu0 %v150
    %229 = vmatpush.msra.mxu0 %v149
    %230 = vmatpush.msra.mxu0 %v148
    %231 = vmatpush.msra.mxu0 %v147
    %232 = vmatmul.f32.gmra.mxu0 %v211
    %v233 = vpop.f32.mrf.mxu0
    %v234 = vadd.f32 0.0, %v233
    %235 = vdwg.mxu0
    %v236 = vadd.f32 %v215, %v234
    %v237 = vtanh.pop %v236
    %s238 = scalar_lea.vmem [#allocation4], 16
    %239 = vst [vmem:[%s238] sm:$0xff] %v237
    %s240 = scalar_lea.vmem [#allocation3], 24
    %v241 = vld [vmem:[%s240] sm:$0xff]
    %242 = vmatpush.msra.mxu0 %v162
    %243 = vmatpush.msra.mxu0 %v161
    %244 = vmatpush.msra.mxu0 %v160
    %245 = vmatpush.msra.mxu0 %v159
    %246 = vmatpush.msra.mxu0 %v158
    %247 = vmatpush.msra.mxu0 %v157
    %248 = vmatpush.msra.mxu0 %v156
    %249 = vmatpush.msra.mxu0 %v155
    %250 = vmatpush.msra.mxu0 %v154
    %251 = vmatpush.msra.mxu0 %v153
    %252 = vmatpush.msra.mxu0 %v152
    %253 = vmatpush.msra.mxu0 %v151
    %254 = vmatpush.msra.mxu0 %v150
    %255 = vmatpush.msra.mxu0 %v149
    %256 = vmatpush.msra.mxu0 %v148
    %257 = vmatpush.msra.mxu0 %v147
    %258 = vmatmul.f32.gmra.mxu0 %v237
    %v259 = vpop.f32.mrf.mxu0
    %v260 = vadd.f32 0.0, %v259
    %261 = vdwg.mxu0
    %v262 = vadd.f32 %v241, %v260
    %v263 = vtanh.pop %v262
    %s264 = scalar_lea.vmem [#allocation4], 24
    %265 = vst [vmem:[%s264] sm:$0xff] %v263
    %s266 = scalar_lea.vmem [#allocation3], 32
    %v267 = vld [vmem:[%s266] sm:$0xff]
    %268 = vmatpush.msra.mxu0 %v162
    %269 = vmatpush.msra.mxu0 %v161
    %270 = vmatpush.msra.mxu0 %v160
    %271 = vmatpush.msra.mxu0 %v159
    %272 = vmatpush.msra.mxu0 %v158
    %273 = vmatpush.msra.mxu0 %v157
    %274 = vmatpush.msra.mxu0 %v156
    %275 = vmatpush.msra.mxu0 %v155
    %276 = vmatpush.msra.mxu0 %v154
    %277 = vmatpush.msra.mxu0 %v153
    %278 = vmatpush.msra.mxu0 %v152
    %279 = vmatpush.msra.mxu0 %v151
    %280 = vmatpush.msra.mxu0 %v150
    %281 = vmatpush.msra.mxu0 %v149
    %282 = vmatpush.msra.mxu0 %v148
    %283 = vmatpush.msra.mxu0 %v147
    %284 = vmatmul.f32.gmra.mxu0 %v263
    %v285 = vpop.f32.mrf.mxu0
    %v286 = vadd.f32 0.0, %v285
    %287 = vdwg.mxu0
    %v288 = vadd.f32 %v267, %v286
    %v289 = vtanh.pop %v288
    %s290 = scalar_lea.vmem [#allocation4], 32
    %291 = vst [vmem:[%s290] sm:$0xff] %v289
    %s292 = scalar_lea.vmem [#allocation3], 40
    %v293 = vld [vmem:[%s292] sm:$0xff]
    %294 = vmatpush.msra.mxu0 %v162
    %295 = vmatpush.msra.mxu0 %v161
    %296 = vmatpush.msra.mxu0 %v160
    %297 = vmatpush.msra.mxu0 %v159
    %298 = vmatpush.msra.mxu0 %v158
    %299 = vmatpush.msra.mxu0 %v157
    %300 = vmatpush.msra.mxu0 %v156
    %301 = vmatpush.msra.mxu0 %v155
    %302 = vmatpush.msra.mxu0 %v154
    %303 = vmatpush.msra.mxu0 %v153
    %304 = vmatpush.msra.mxu0 %v152
    %305 = vmatpush.msra.mxu0 %v151
    %306 = vmatpush.msra.mxu0 %v150
    %307 = vmatpush.msra.mxu0 %v149
    %308 = vmatpush.msra.mxu0 %v148
    %309 = vmatpush.msra.mxu0 %v147
    %310 = vmatmul.f32.gmra.mxu0 %v289
    %v311 = vpop.f32.mrf.mxu0
    %v312 = vadd.f32 0.0, %v311
    %313 = vdwg.mxu0
    %v314 = vadd.f32 %v293, %v312
    %v315 = vtanh.pop %v314
    %s316 = scalar_lea.vmem [#allocation4], 40
    %317 = vst [vmem:[%s316] sm:$0xff] %v315
    %s318 = scalar_lea.vmem [#allocation3], 48
    %v319 = vld [vmem:[%s318] sm:$0xff]
    %320 = vmatpush.msra.mxu0 %v162
    %321 = vmatpush.msra.mxu0 %v161
    %322 = vmatpush.msra.mxu0 %v160
    %323 = vmatpush.msra.mxu0 %v159
    %324 = vmatpush.msra.mxu0 %v158
    %325 = vmatpush.msra.mxu0 %v157
    %326 = vmatpush.msra.mxu0 %v156
    %327 = vmatpush.msra.mxu0 %v155
    %328 = vmatpush.msra.mxu0 %v154
    %329 = vmatpush.msra.mxu0 %v153
    %330 = vmatpush.msra.mxu0 %v152
    %331 = vmatpush.msra.mxu0 %v151
    %332 = vmatpush.msra.mxu0 %v150
    %333 = vmatpush.msra.mxu0 %v149
    %334 = vmatpush.msra.mxu0 %v148
    %335 = vmatpush.msra.mxu0 %v147
    %336 = vmatmul.f32.gmra.mxu0 %v315
    %v337 = vpop.f32.mrf.mxu0
    %v338 = vadd.f32 0.0, %v337
    %339 = vdwg.mxu0
    %v340 = vadd.f32 %v319, %v338
    %v341 = vtanh.pop %v340
    %s342 = scalar_lea.vmem [#allocation4], 48
    %343 = vst [vmem:[%s342] sm:$0xff] %v341
    %s344 = scalar_lea.vmem [#allocation3], 56
    %v345 = vld [vmem:[%s344] sm:$0xff]
    %346 = vmatpush.msra.mxu0 %v162
    %347 = vmatpush.msra.mxu0 %v161
    %348 = vmatpush.msra.mxu0 %v160
    %349 = vmatpush.msra.mxu0 %v159
    %350 = vmatpush.msra.mxu0 %v158
    %351 = vmatpush.msra.mxu0 %v157
    %352 = vmatpush.msra.mxu0 %v156
    %353 = vmatpush.msra.mxu0 %v155
    %354 = vmatpush.msra.mxu0 %v154
    %355 = vmatpush.msra.mxu0 %v153
    %356 = vmatpush.msra.mxu0 %v152
    %357 = vmatpush.msra.mxu0 %v151
    %358 = vmatpush.msra.mxu0 %v150
    %359 = vmatpush.msra.mxu0 %v149
    %360 = vmatpush.msra.mxu0 %v148
    %361 = vmatpush.msra.mxu0 %v147
    %362 = vmatmul.f32.gmra.mxu0 %v341
    %v363 = vpop.f32.mrf.mxu0
    %v364 = vadd.f32 0.0, %v363
    %365 = vdwg.mxu0
    %v366 = vadd.f32 %v345, %v364
    %v367 = vtanh.pop %v366
    %s368 = scalar_lea.vmem [#allocation4], 56
    %369 = vst [vmem:[%s368] sm:$0xff] %v367
    %370 = vst [vmem:[#allocation2] sm:$0xff] %v367
    %v371 = vld [vmem:[#allocation4] sm:$0xff]
    %v372 = vld [vmem:[#allocation4 + $0x8] sm:$0xff]
    %v373 = vld [vmem:[#allocation4 + $0x10] sm:$0xff]
    %v374 = vld [vmem:[#allocation4 + $0x18] sm:$0xff]
    %v375 = vld [vmem:[#allocation4 + $0x20] sm:$0xff]
    %v376 = vld [vmem:[#allocation4 + $0x28] sm:$0xff]
    %v377 = vld [vmem:[#allocation4 + $0x30] sm:$0xff]
    %v378 = vld [vmem:[#allocation4 + $0x38] sm:$0xff]
    %v379 = vrot.slane %v373, 4
    %vm380 = vcmask 1047556
    %v381 = vsel %vm380, %v379, %v371
    %v382 = vrot.slane %v371, 4
    %v383 = vsel %vm380, %v373, %v382
    %v385 = vunpack.c.l.s4 1983009808
    %v386 = vunpack.c.0.s8 %v385
    %v387 = vperm.slane %v381, %v386
    %v389 = vunpack.c.l.s4 1983009808
    %v390 = vunpack.c.0.s8 %v389
    %v391 = vperm.slane %v383, %v390
    %v392 = vrot.slane %v374, 4
    %v393 = vsel %vm380, %v392, %v372
    %v394 = vrot.slane %v372, 4
    %v395 = vsel %vm380, %v374, %v394
    %v397 = vunpack.c.l.s4 1983009808
    %v398 = vunpack.c.0.s8 %v397
    %v399 = vperm.slane %v393, %v398
    %v401 = vunpack.c.l.s4 1983009808
    %v402 = vunpack.c.0.s8 %v401
    %v403 = vperm.slane %v395, %v402
    %v404 = vrot.slane %v377, 4
    %v405 = vsel %vm380, %v404, %v375
    %v406 = vrot.slane %v375, 4
    %v407 = vsel %vm380, %v377, %v406
    %v409 = vunpack.c.l.s4 1983009808
    %v410 = vunpack.c.0.s8 %v409
    %v411 = vperm.slane %v405, %v410
    %v413 = vunpack.c.l.s4 1983009808
    %v414 = vunpack.c.0.s8 %v413
    %v415 = vperm.slane %v407, %v414
    %v416 = vrot.slane %v378, 4
    %v417 = vsel %vm380, %v416, %v376
    %v418 = vrot.slane %v376, 4
    %v419 = vsel %vm380, %v378, %v418
    %v421 = vunpack.c.l.s4 1983009808
    %v422 = vunpack.c.0.s8 %v421
    %v423 = vperm.slane %v417, %v422
    %v425 = vunpack.c.l.s4 1983009808
    %v426 = vunpack.c.0.s8 %v425
    %v427 = vperm.slane %v419, %v426
    %v428 = vrot.slane %v399, 4
    %v429 = vsel %vm380, %v428, %v387
    %v430 = vrot.slane %v387, 4
    %v431 = vsel %vm380, %v399, %v430
    %v433 = vunpack.c.l.s4 1934713408
    %v434 = vunpack.c.0.s8 %v433
    %v435 = vperm.slane %v429, %v434
    %v437 = vunpack.c.l.s4 1934713408
    %v438 = vunpack.c.0.s8 %v437
    %v439 = vperm.slane %v431, %v438
    %v440 = vrot.slane %v403, 4
    %v441 = vsel %vm380, %v440, %v391
    %v442 = vrot.slane %v391, 4
    %v443 = vsel %vm380, %v403, %v442
    %v445 = vunpack.c.l.s4 1934713408
    %v446 = vunpack.c.0.s8 %v445
    %v447 = vperm.slane %v441, %v446
    %v449 = vunpack.c.l.s4 1934713408
    %v450 = vunpack.c.0.s8 %v449
    %v451 = vperm.slane %v443, %v450
    %v452 = vrot.slane %v423, 4
    %v453 = vsel %vm380, %v452, %v411
    %v454 = vrot.slane %v411, 4
    %v455 = vsel %vm380, %v423, %v454
    %v457 = vunpack.c.l.s4 1934713408
    %v458 = vunpack.c.0.s8 %v457
    %v459 = vperm.slane %v453, %v458
    %v461 = vunpack.c.l.s4 1934713408
    %v462 = vunpack.c.0.s8 %v461
    %v463 = vperm.slane %v455, %v462
    %v464 = vrot.slane %v427, 4
    %v465 = vsel %vm380, %v464, %v415
    %v466 = vrot.slane %v415, 4
    %v467 = vsel %vm380, %v427, %v466
    %v469 = vunpack.c.l.s4 1934713408
    %v470 = vunpack.c.0.s8 %v469
    %v471 = vperm.slane %v465, %v470
    %v473 = vunpack.c.l.s4 1934713408
    %v474 = vunpack.c.0.s8 %v473
    %v475 = vperm.slane %v467, %v474
    %v476 = vrot.slane %v459, 4
    %v477 = vsel %vm380, %v476, %v435
    %v478 = vrot.slane %v435, 4
    %v479 = vsel %vm380, %v459, %v478
    %v480 = vrot.slane %v463, 4
    %v481 = vsel %vm380, %v480, %v439
    %v482 = vrot.slane %v439, 4
    %v483 = vsel %vm380, %v463, %v482
    %v484 = vrot.slane %v471, 4
    %v485 = vsel %vm380, %v484, %v447
    %v486 = vrot.slane %v447, 4
    %v487 = vsel %vm380, %v471, %v486
    %v488 = vrot.slane %v475, 4
    %v489 = vsel %vm380, %v488, %v451
    %v490 = vrot.slane %v451, 4
    %v491 = vsel %vm380, %v475, %v490
    %492 = vst [vmem:[#allocation11] sm:$0xff] %v477
    %493 = vst [vmem:[#allocation11 + $0x8] sm:$0xff] %v479
    %494 = vst [vmem:[#allocation11 + $0x10] sm:$0xff] %v481
    %495 = vst [vmem:[#allocation11 + $0x18] sm:$0xff] %v483
    %496 = vst [vmem:[#allocation11 + $0x20] sm:$0xff] %v485
    %497 = vst [vmem:[#allocation11 + $0x28] sm:$0xff] %v487
    %498 = vst [vmem:[#allocation11 + $0x30] sm:$0xff] %v489
    %499 = vst [vmem:[#allocation11 + $0x38] sm:$0xff] %v491
    // Predicated region
    $region34: #{tpu_custom_call.1} parent=1 // pred_check
      _
    $region35: #{tpu_custom_call.1} parent=1 // pred_check_branch
      %501 = sbr.rel (0) target = $region37
    $region36: #{tpu_custom_call.1} parent=1 // pred_region
      %503 = vsyncadd [#allocation7], 0
      %s504 = sshll.u32 [#allocation11], 4
      %s505 = int_to_ptr.vmem [resolvable:$true] %s504
      %s506 = sshll.u32 %s4, 4
      %s507 = int_to_ptr.hbm [resolvable:$true] %s506
      %512 = dma.vmem_to_hbm [thread:$0]  %s505, 1024, %s507, [#allocation7], 128, 128, 8
    $region37: #{tpu_custom_call.1} parent=1 // pred_fallthru
      _
    // Predicated region
    $region38: #{tpu_custom_call.1} parent=1 // pred_check
      _
    $region39: #{tpu_custom_call.1} parent=1 // pred_check_branch
      %514 = sbr.rel (0) target = $region41
    $region40: #{tpu_custom_call.1} parent=1 // pred_region
      %516 = dma.done [#allocation7], 1024
    $region41: #{tpu_custom_call.1} parent=1 // pred_fallthru
      _
    %517 = vsyncpa [#allocation6], 1
    %518 = vsyncpa [#allocation9], 1
    %519 = vsyncpa [#allocation7], 1

</llo_original>
